<compile_context>
chip_gen: v6e
topology: v6e:2x2x1
jax: 0.10.0
libtpu: 0.0.40
codegen_flags: <defaults>
</compile_context>

<pallas_src>
import functools

import jax
import jax.numpy as jnp
import numpy as np
from jax.experimental import pallas as pl
from jax.experimental.pallas import tpu as pltpu


# ---------------------------------------------------------------------------
# Kernels
# ---------------------------------------------------------------------------

def _class_tta_flat_kernel(x_ref, w_ref, o_ref, *, n_augs, n_classes):
    """Lane-aligned fast path.

    x_ref: (tb, A*C) input tile, w_ref: (A, C) f32 coeffs (pre-scaled by 1/T),
    o_ref: (tb, C) output tile.  Accumulate over augs with plain VPU adds.
    """
    w = w_ref[...]  # (A, C) f32, tiny and resident every grid step
    acc = x_ref[:, 0:n_classes].astype(jnp.float32) * w[0:1, :]
    for a in range(1, n_augs):  # n_augs is small; fully unrolled at trace time
        lo = a * n_classes
        acc = acc + x_ref[:, lo:lo + n_classes].astype(jnp.float32) * w[a:a + 1, :]
    o_ref[...] = acc.astype(o_ref.dtype)


def _class_tta_3d_kernel(x_ref, w_ref, o_ref):
    """Fallback when n_classes is not a multiple of 128.

    x_ref: (tb, A, C), w_ref: (A, C) f32 (pre-scaled by 1/T), o_ref: (tb, C).
    """
    # TODO(synk): sub-128 n_classes leaves output stores lane-masked; for real
    # workloads n_classes is usually >= 128 and the flat path is taken instead.
    x = x_ref[...].astype(jnp.float32)
    w = w_ref[...]
    o_ref[...] = jnp.sum(w[None, :, :] * x, axis=1).astype(o_ref.dtype)


# ---------------------------------------------------------------------------
# pallas_call wrappers
# ---------------------------------------------------------------------------

def _weighted_sum_flat(x3, w, block_b):
    B, A, C = x3.shape
    x_flat = x3.reshape(B, A * C)  # contiguous => free reshape
    kernel = functools.partial(_class_tta_flat_kernel, n_augs=A, n_classes=C)
    return pl.pallas_call(
        kernel,
        out_shape=jax.ShapeDtypeStruct((B, C), x3.dtype),
        grid=(pl.cdiv(B, block_b),),
        in_specs=[
            pl.BlockSpec((block_b, A * C), lambda i: (i, 0)),
            pl.BlockSpec((A, C), lambda i: (0, 0)),
        ],
        out_specs=pl.BlockSpec((block_b, C), lambda i: (i, 0)),
        compiler_params=pltpu.CompilerParams(dimension_semantics=("parallel",)),
    )(x_flat, w)


def _weighted_sum_3d(x3, w, block_b):
    B, A, C = x3.shape
    return pl.pallas_call(
        _class_tta_3d_kernel,
        out_shape=jax.ShapeDtypeStruct((B, C), x3.dtype),
        grid=(pl.cdiv(B, block_b),),
        in_specs=[
            pl.BlockSpec((block_b, A, C), lambda i: (i, 0, 0)),
            pl.BlockSpec((A, C), lambda i: (0, 0)),
        ],
        out_specs=pl.BlockSpec((block_b, C), lambda i: (i, 0)),
        compiler_params=pltpu.CompilerParams(dimension_semantics=("parallel",)),
    )(x3, w)


def _default_block_b(B, row_bytes, target_bytes=2 << 20):
    """Pick a batch tile so one input tile is ~2 MiB (multiple of 8 rows)."""
    if B <= 8:
        return B
    bb = max(8, (int(target_bytes // max(row_bytes, 1)) // 8) * 8)
    return min(bb, B)


def _normalize_block_b(block_b, B):
    block_b = int(block_b)
    if block_b >= B:
        return B
    return max(8, (block_b // 8) * 8)


def class_tta_forward(x, coeffs, temperature=1.0, idxs=None, block_b=None):
    """Pallas implementation of ClassTTA.forward for 3-D and 5-D inputs."""
    if idxs is not None:
        # PyTorch only indexes coeffs; x already holds the selected augs.
        coeffs = jnp.take(coeffs, jnp.asarray(idxs), axis=0)

    inv_temp = 1.0 / float(temperature)

    if x.ndim == 3:
        B, A, C = x.shape
        x3 = x
        w = coeffs.astype(jnp.float32) * inv_temp
        out_shape = None
    elif x.ndim == 5:
        B, A, C, H, W = x.shape
        # out[b,c,h,w] = sum_a coeffs[a,c] * x[b,a,c,h,w] / T
        # Fold (C,H,W) -> C*H*W (free, contiguous); the weight for flat index
        # c*H*W + hw is coeffs[a, c], i.e. coeffs repeated H*W times per class.
        x3 = x.reshape(B, A, C * H * W)
        w = jnp.repeat(coeffs.astype(jnp.float32) * inv_temp, H * W, axis=1)
        out_shape = (B, C, H, W)
        C = C * H * W
    else:
        raise ValueError(f"ClassTTA expects 3-D or 5-D input, got ndim={x.ndim}")

    if w.shape != (A, C):
        raise ValueError(f"coeffs shape {w.shape} incompatible with x {x.shape}")

    if block_b is None:
        block_b = _default_block_b(B, A * C * x3.dtype.itemsize)
    else:
        block_b = _normalize_block_b(block_b, B)

    if C % 128 == 0:
        out = _weighted_sum_flat(x3, w, block_b)
    else:
        out = _weighted_sum_3d(x3, w, block_b)

    if out_shape is not None:
        out = out.reshape(out_shape)
    return out


# ---------------------------------------------------------------------------
# Demo / correctness check
# ---------------------------------------------------------------------------

if __name__ == "__main__":
    key = jax.random.PRNGKey(0)
    k1, k2, k3, k4 = jax.random.split(key, 4)

    def ref(x, coeffs, temperature, idxs=None):
        xs = x / temperature
        c = coeffs if idxs is None else jnp.take(coeffs, jnp.asarray(idxs), axis=0)
        if x.ndim == 3:
            c = c[None, :, :]
        else:
            c = c[None, :, :, None, None]
        return jnp.sum(c * xs, axis=1)

    # 1) 3-D logits, lane-aligned classes: flattened fast path, 4-step grid.
    B, A, C = 256, 4, 128
    x1 = jax.random.normal(k1, (B, A, C), dtype=jnp.float32)
    coeffs1 = jnp.full((A, C), 1.0 / A, dtype=jnp.float32)  # fill_(1/n_augs)
    out1 = jax.block_until_ready(class_tta_forward(x1, coeffs1, temperature=2.0,
                                                   block_b=64))
    np.testing.assert_allclose(np.asarray(out1), np.asarray(ref(x1, coeffs1, 2.0)),
                               rtol=1e-5, atol=1e-5)

    # 2) 3-D logits, small n_classes: fallback (block_b, A, C) path.
    B2, A2, C2 = 64, 4, 16
    x2 = jax.random.normal(k2, (B2, A2, C2), dtype=jnp.float32)
    coeffs2 = jnp.full((A2, C2), 1.0 / A2, dtype=jnp.float32)
    out2 = jax.block_until_ready(class_tta_forward(x2, coeffs2, temperature=1.0))
    np.testing.assert_allclose(np.asarray(out2), np.asarray(ref(x2, coeffs2, 1.0)),
                               rtol=1e-5, atol=1e-5)

    # 3) idxs: only coeffs rows are gathered (x already has the selected augs).
    idxs = jnp.array([0, 2], dtype=jnp.int32)
    coeffs3 = (jnp.full((4, C), 0.25, dtype=jnp.float32)
               * jnp.arange(1.0, 5.0, dtype=jnp.float32)[:, None])
    x3 = jax.random.normal(k3, (B, 2, C), dtype=jnp.float32)
    out3 = jax.block_until_ready(class_tta_forward(x3, coeffs3, temperature=2.0,
                                                   idxs=idxs, block_b=64))
    np.testing.assert_allclose(np.asarray(out3),
                               np.asarray(ref(x3, coeffs3, 2.0, idxs=idxs)),
                               rtol=1e-5, atol=1e-5)

    # 4) 5-D input (B, n_augs, n_classes, H, W).
    B4, A4, C4, H4, W4 = 2, 4, 4, 16, 16
    x4 = jax.random.normal(k4, (B4, A4, C4, H4, W4), dtype=jnp.float32)
    coeffs4 = jnp.full((A4, C4), 1.0 / A4, dtype=jnp.float32)
    out4 = jax.block_until_ready(class_tta_forward(x4, coeffs4, temperature=1.5))
    np.testing.assert_allclose(np.asarray(out4), np.asarray(ref(x4, coeffs4, 1.5)),
                               rtol=1e-5, atol=1e-5)

    print("KERNEL_OK")
</pallas_src>

<mosaic_0001>
module attributes {stable_mosaic.version = 11 : i64} {
  func.func @_class_tta_flat_kernel(%arg0: i32, %arg1: memref<64x512xf32, #tpu.memory_space<vmem>>, %arg2: memref<4x128xf32, #tpu.memory_space<vmem>>, %arg3: memref<64x128xf32, #tpu.memory_space<vmem>>) attributes {dimension_semantics = [#tpu.dimension_semantics<parallel>], iteration_bounds = array<i64: 4>, scalar_prefetch = 0 : i64, scratch_operands = 0 : i64, tpu.core_type = #tpu.core_type<tc>, window_params = [{transform_indices = @transform_0, window_bounds = array<i64: 64, 512>}, {pipeline_mode = #tpu.pipeline_mode<synchronous>, transform_indices = @transform_1, window_bounds = array<i64: 4, 128>}, {transform_indices = @transform_2, window_bounds = array<i64: 64, 128>}]} {
    %c0 = arith.constant 0 : index
    %c0_0 = arith.constant 0 : index
    %0 = vector.load %arg2[%c0, %c0_0] : memref<4x128xf32, #tpu.memory_space<vmem>>, vector<4x128xf32>
    %c0_1 = arith.constant 0 : index
    %c0_2 = arith.constant 0 : index
    %1 = vector.load %arg1[%c0_1, %c0_2] : memref<64x512xf32, #tpu.memory_space<vmem>>, vector<64x128xf32>
    %2 = vector.extract_strided_slice %0 {offsets = [0, 0], sizes = [1, 128], strides = [1, 1]} : vector<4x128xf32> to vector<1x128xf32>
    %3 = vector.broadcast %2 : vector<1x128xf32> to vector<64x128xf32>
    %4 = arith.mulf %1, %3 : vector<64x128xf32>
    %c0_3 = arith.constant 0 : index
    %c128 = arith.constant 128 : index
    %5 = vector.load %arg1[%c0_3, %c128] : memref<64x512xf32, #tpu.memory_space<vmem>>, vector<64x128xf32>
    %6 = vector.extract_strided_slice %0 {offsets = [1, 0], sizes = [1, 128], strides = [1, 1]} : vector<4x128xf32> to vector<1x128xf32>
    %7 = vector.broadcast %6 : vector<1x128xf32> to vector<64x128xf32>
    %8 = arith.mulf %5, %7 : vector<64x128xf32>
    %9 = arith.addf %4, %8 : vector<64x128xf32>
    %c0_4 = arith.constant 0 : index
    %c256 = arith.constant 256 : index
    %10 = vector.load %arg1[%c0_4, %c256] : memref<64x512xf32, #tpu.memory_space<vmem>>, vector<64x128xf32>
    %11 = vector.extract_strided_slice %0 {offsets = [2, 0], sizes = [1, 128], strides = [1, 1]} : vector<4x128xf32> to vector<1x128xf32>
    %12 = vector.broadcast %11 : vector<1x128xf32> to vector<64x128xf32>
    %13 = arith.mulf %10, %12 : vector<64x128xf32>
    %14 = arith.addf %9, %13 : vector<64x128xf32>
    %c0_5 = arith.constant 0 : index
    %c384 = arith.constant 384 : index
    %15 = vector.load %arg1[%c0_5, %c384] : memref<64x512xf32, #tpu.memory_space<vmem>>, vector<64x128xf32>
    %16 = vector.extract_strided_slice %0 {offsets = [3, 0], sizes = [1, 128], strides = [1, 1]} : vector<4x128xf32> to vector<1x128xf32>
    %17 = vector.broadcast %16 : vector<1x128xf32> to vector<64x128xf32>
    %18 = arith.mulf %15, %17 : vector<64x128xf32>
    %19 = arith.addf %14, %18 : vector<64x128xf32>
    %c0_6 = arith.constant 0 : index
    %c0_7 = arith.constant 0 : index
    %20 = vector.load %arg3[%c0_6, %c0_7] : memref<64x128xf32, #tpu.memory_space<vmem>>, vector<64x128xf32>
    tpu.vector_store %arg3[%c0_6, %c0_7], %19 {strides = array<i32>} : memref<64x128xf32, #tpu.memory_space<vmem>>, vector<64x128xf32>,
    return
  }
  func.func @transform_0(%arg0: i32) -> (i32, i32) {
    %c0_i32 = arith.constant 0 : i32
    %c0_i32_0 = arith.constant 0 : i32
    return %arg0, %c0_i32 : i32, i32
  }
  func.func @transform_1(%arg0: i32) -> (i32, i32) {
    %c0_i32 = arith.constant 0 : i32
    %c0_i32_0 = arith.constant 0 : i32
    %c0_i32_1 = arith.constant 0 : i32
    return %c0_i32, %c0_i32_0 : i32, i32
  }
  func.func @transform_2(%arg0: i32) -> (i32, i32) {
    %c0_i32 = arith.constant 0 : i32
    %c0_i32_0 = arith.constant 0 : i32
    return %arg0, %c0_i32 : i32, i32
  }
}

</mosaic_0001>

<llo_original>
// kernel: tpu_custom_call.1
$region0: #{tpu_custom_call.1}
  #allocation0 [shape = 'u32[]', space=smem, size = 0x4, offset = 0x4, fixed_abs, tag = 'smem constant byte address 0x4 - core index']
  #allocation1 [shape = 'u32[144,128]{1,0:T(1,128)}', space=vmem, size = 0x12000, scoped, tag = 'internal scratch']
  %s0 = inlined_call_operand.hbm [shape: f32[256,512], index: 0, kind: input, shape index: {}]
  %s1 = inlined_call_operand.hbm [shape: f32[4,128], index: 1, kind: input, shape index: {}]
  %s2 = inlined_call_operand.hbm [shape: f32[256,128], index: 2, kind: output, shape index: {}]
  %s3 = sld [smem:[#allocation0]]
  $region49: #{tpu_custom_call.1} parent=0
    _
  %s5 = ssub.s32 1, %s3
  %s6 = scalar_select 0, %s5, %s3
  $region1: #{tpu_custom_call.1} parent=0
    #allocation2 [shape = 'u8[262144]{0}', space=vmem, size = 0x40000, scoped, tag = 'input window, operand 0']
    #allocation3 [shape = 's32[2]{0}', space=sflag, size = 0x8, scoped, tag = 'scoped memory for tpu_custom_call.1']
    #allocation4 [shape = 's32[2]{0}', space=sflag, size = 0x8, scoped, tag = 'scoped memory for tpu_custom_call.1']
    #allocation5 [shape = 'u8[2048]{0}', space=vmem, size = 0x800, scoped, tag = 'input window, operand 1, single buffered']
    #allocation6 [shape = 's32[1]{0}', space=sflag, size = 0x4, scoped, tag = 'scoped memory for tpu_custom_call.1']
    #allocation7 [shape = 'u8[65536]{0}', space=vmem, size = 0x10000, scoped, tag = 'output window, operand 0']
    %7 = vsyncpa [#allocation3], 0
    %s8 = scalar_lea.sflag [#allocation3], 1
    %9 = vsyncpa %s8, 0
    %10 = vsyncpa [#allocation6], 0
    %11 = vsyncpa [#allocation4], 0
    %s12 = scalar_lea.sflag [#allocation4], 1
    %13 = vsyncpa %s12, 0
    loop: start=0, step=1, limit=6
    $region2: #{tpu_custom_call.1} parent=1 // loop_pre_header
      _
    $region3: #{tpu_custom_call.1} parent=1 // loop_header
      %s15 = sphi 0, %s19
      %p16 = scmp.ge.s32.totalorder %s15, 6
      %s25 = sphi 0, %s27
      %s28 = sphi 0, %s25
      %s29 = sphi 0, %s28
      %s45 = sphi 0, %s29
      %s49 = sphi 0, %s49
      %s51 = sphi 0, %s49
      %s52 = sphi 0, %s51
      %s66 = sphi 0, %s52
      %s72 = sphi 0, %s74
      %s75 = sphi 0, %s72
      %s76 = sphi 0, %s75
      %s92 = sphi 0, %s76
    $region4: #{tpu_custom_call.1} parent=1 // loop_header_branch
      %18 = sbr.rel (%p16) target = $region8
    $region5: #{tpu_custom_call.1} parent=1 // loop_body
      %s20 = ssub.s32 %s15, 1
      %s21 = ssub.s32 %s15, 2
      %s22 = sadd.s32 %s15, 1
      %s23 = ssub.s32 %s15, %s22
      %p24 = scmp.eq.s32.totalorder %s23, 0
      %s26 = sadd.s32 %s25, 1
      %s27 = scalar_select %p24, %s25, %s26
      %p30 = pneg %p24
      %p31 = scmp.eq.s32.totalorder %s15, 3
      %p32 = por %p30, %p31
      %p33 = scmp.ne.s32.totalorder %s25, %s28
      %p34 = scmp.eq.s32.totalorder %s15, 0
      %p35 = por %p33, %p34
      %p36 = scmp.ne.s32.totalorder %s25, %s28
      %p37 = scmp.eq.s32.totalorder %s20, 3
      %p38 = por %p36, %p37
      %p39 = scmp.ne.s32.totalorder %s28, %s29
      %p40 = scmp.eq.s32.totalorder %s20, 0
      %p41 = por %p39, %p40
      %p42 = scmp.ne.s32.totalorder %s28, %s29
      %p43 = scmp.eq.s32.totalorder %s21, 3
      %p44 = por %p42, %p43
      %p46 = scmp.ne.s32.totalorder %s29, %s45
      %p47 = scmp.eq.s32.totalorder %s21, 0
      %p48 = por %p46, %p47
      %s50 = sadd.s32 %s49, 1
      %p53 = scmp.eq.s32.totalorder %s15, 3
      %p54 = scmp.ne.s32.totalorder %s49, %s51
      %p55 = scmp.eq.s32.totalorder %s15, 0
      %p56 = por %p54, %p55
      %p57 = scmp.ne.s32.totalorder %s49, %s51
      %p58 = scmp.eq.s32.totalorder %s20, 3
      %p59 = por %p57, %p58
      %p60 = scmp.ne.s32.totalorder %s51, %s52
      %p61 = scmp.eq.s32.totalorder %s20, 0
      %p62 = por %p60, %p61
      %p63 = scmp.ne.s32.totalorder %s51, %s52
      %p64 = scmp.eq.s32.totalorder %s21, 3
      %p65 = por %p63, %p64
      %p67 = scmp.ne.s32.totalorder %s52, %s66
      %p68 = scmp.eq.s32.totalorder %s21, 0
      %p69 = por %p67, %p68
      %s70 = ssub.s32 %s15, %s22
      %p71 = scmp.eq.s32.totalorder %s70, 0
      %s73 = sadd.s32 %s72, 1
      %s74 = scalar_select %p71, %s72, %s73
      %p77 = pneg %p71
      %p78 = scmp.eq.s32.totalorder %s15, 3
      %p79 = por %p77, %p78
      %p80 = scmp.ne.s32.totalorder %s72, %s75
      %p81 = scmp.eq.s32.totalorder %s15, 0
      %p82 = por %p80, %p81
      %p83 = scmp.ne.s32.totalorder %s72, %s75
      %p84 = scmp.eq.s32.totalorder %s20, 3
      %p85 = por %p83, %p84
      %p86 = scmp.ne.s32.totalorder %s75, %s76
      %p87 = scmp.eq.s32.totalorder %s20, 0
      %p88 = por %p86, %p87
      %p89 = scmp.ne.s32.totalorder %s75, %s76
      %p90 = scmp.eq.s32.totalorder %s21, 3
      %p91 = por %p89, %p90
      %p93 = scmp.ne.s32.totalorder %s76, %s92
      %p94 = scmp.eq.s32.totalorder %s21, 0
      %p95 = por %p93, %p94
      %p96 = scmp.le.s32.totalorder 1, %s15
      %p97 = scmp.lt.s32.totalorder %s15, 5
      %p98 = pnand %p96, %p97
      %p99 = pneg %p98
      // Predicated region
      $region9: #{tpu_custom_call.1} parent=5 // pred_check
        _
      $region10: #{tpu_custom_call.1} parent=5 // pred_check_branch
        %101 = sbr.rel (%p98) target = $region12
      $region11: #{tpu_custom_call.1} parent=5 // pred_region
        %s102 = ssub.s32 %s15, 1
        // Predicated region
        $region13: #{tpu_custom_call.1} parent=11 // pred_check
          %p103 = pneg %p62
        $region14: #{tpu_custom_call.1} parent=11 // pred_check_branch
          %105 = sbr.rel (%p103) target = $region16
        $region15: #{tpu_custom_call.1} parent=11 // pred_region
          %s107 = ssub.s32 64, 64
          %108 = vsyncadd [#allocation6], %s107
          %s110 = sshll.u32 [#allocation5], 4
          %s111 = int_to_ptr.vmem [resolvable:$true] %s110
          %113 = dma.hbm_to_vmem [thread:$0]  %s1, 64, %s111, [#allocation6]
        $region16: #{tpu_custom_call.1} parent=11 // pred_fallthru
          _
      $region12: #{tpu_custom_call.1} parent=5 // pred_fallthru
        _
      %p114 = scmp.lt.s32.totalorder %s15, 4
      // Predicated region
      $region17: #{tpu_custom_call.1} parent=5 // pred_check
        %p115 = pneg %p114
      $region18: #{tpu_custom_call.1} parent=5 // pred_check_branch
        %117 = sbr.rel (%p115) target = $region20
      $region19: #{tpu_custom_call.1} parent=5 // pred_region
        // Predicated region
        $region21: #{tpu_custom_call.1} parent=19 // pred_check
          %p118 = pneg %p35
        $region22: #{tpu_custom_call.1} parent=19 // pred_check_branch
          %120 = sbr.rel (%p118) target = $region24
        $region23: #{tpu_custom_call.1} parent=19 // pred_region
          %s121 = sand.u32 %s25, 1
          %s122 = scalar_lea.sflag [#allocation3], %s121
          %s123 = sand.u32 %s25, 1
          %s124 = smul.addr %s123, 256
          %s125 = scalar_lea.vmem [#allocation2], %s124
          %s126 = smul.u32 8, %s15
          %s128 = ssub.s32 4096, 4096
          %129 = vsyncadd %s122, %s128
          %s130 = smul.addr %s126, 4
          %s131 = smul.addr %s130, 128
          %s132 = scalar_lea.hbm %s0, %s131
          %s133 = sshll.u32 %s125, 4
          %s134 = int_to_ptr.vmem [resolvable:$true] %s133
          %139 = dma.hbm_to_vmem [thread:$0]  %s132, 4096, %s134, %s122, 512, 512, 32
        $region24: #{tpu_custom_call.1} parent=19 // pred_fallthru
          _
      $region20: #{tpu_custom_call.1} parent=5 // pred_fallthru
        _
      %p140 = scmp.le.s32.totalorder 1, %s15
      %p141 = scmp.lt.s32.totalorder %s15, 5
      %p142 = pnand %p140, %p141
      %p143 = pneg %p142
      // Predicated region
      $region25: #{tpu_custom_call.1} parent=5 // pred_check
        _
      $region26: #{tpu_custom_call.1} parent=5 // pred_check_branch
        %145 = sbr.rel (%p142) target = $region28
      $region27: #{tpu_custom_call.1} parent=5 // pred_region
        %s146 = ssub.s32 %s15, 1
        %s147 = sand.u32 %s28, 1
        %s148 = scalar_lea.sflag [#allocation3], %s147
        %s149 = sand.u32 %s28, 1
        %s150 = smul.addr %s149, 256
        %s151 = scalar_lea.vmem [#allocation2], %s150
        // Predicated region
        $region29: #{tpu_custom_call.1} parent=27 // pred_check
          %p152 = pneg %p41
        $region30: #{tpu_custom_call.1} parent=27 // pred_check_branch
          %154 = sbr.rel (%p152) target = $region32
        $region31: #{tpu_custom_call.1} parent=27 // pred_region
          %155 = dma.done %s148, 4096
        $region32: #{tpu_custom_call.1} parent=27 // pred_fallthru
          _
        // Predicated region
        $region33: #{tpu_custom_call.1} parent=27 // pred_check
          %p156 = pneg %p62
        $region34: #{tpu_custom_call.1} parent=27 // pred_check_branch
          %158 = sbr.rel (%p156) target = $region36
        $region35: #{tpu_custom_call.1} parent=27 // pred_region
          %159 = dma.done [#allocation6], 64
        $region36: #{tpu_custom_call.1} parent=27 // pred_fallthru
          _
        %s160 = sand.u32 %s28, 1
        %s161 = scalar_lea.sflag [#allocation3], %s160
        %s162 = sand.u32 %s28, 1
        %s163 = smul.addr %s162, 256
        %s164 = scalar_lea.vmem [#allocation2], %s163
        %p165 = pneg %p41
        %p166 = pneg %p38
        %p167 = pneg %p62
        %p168 = pneg %p59
        %p169 = pneg %p88
        %p170 = pneg %p85
        %s171 = sand.u32 %s75, 1
        %s172 = scalar_lea.sflag [#allocation4], %s171
        %s173 = sand.u32 %s75, 1
        %s174 = smul.addr %s173, 64
        %s175 = scalar_lea.vmem [#allocation7], %s174
        %s176 = smul.u32 8, %s20
        %s177 = smul.u32 8, %s20
        %v178 = vld [vmem:[#allocation5] sm:$0xf]
        %v179 = vld [vmem:[%s151] sm:$0xff]
        %v180 = vld [vmem:[%s151 + $0x20] sm:$0xff]
        %v181 = vld [vmem:[%s151 + $0x40] sm:$0xff]
        %v182 = vld [vmem:[%s151 + $0x60] sm:$0xff]
        %v183 = vld [vmem:[%s151 + $0x80] sm:$0xff]
        %v184 = vld [vmem:[%s151 + $0xa0] sm:$0xff]
        %v185 = vld [vmem:[%s151 + $0xc0] sm:$0xff]
        %v186 = vld [vmem:[%s151 + $0xe0] sm:$0xff]
        %v187 = vlaneseq
        %v188 = vshrl.u32 %v187, 7
        %v189 = vsub.s32 0, %v188
        %v190 = vrot.slane %v178, %v189
        %v191 = vmul.f32 %v179, %v190
        %v192 = vmul.f32 %v180, %v190
        %v193 = vmul.f32 %v181, %v190
        %v194 = vmul.f32 %v182, %v190
        %v195 = vmul.f32 %v183, %v190
        %v196 = vmul.f32 %v184, %v190
        %v197 = vmul.f32 %v185, %v190
        %v198 = vmul.f32 %v186, %v190
        %v199 = vld [vmem:[%s151 + $0x8] sm:$0xff]
        %v200 = vld [vmem:[%s151 + $0x28] sm:$0xff]
        %v201 = vld [vmem:[%s151 + $0x48] sm:$0xff]
        %v202 = vld [vmem:[%s151 + $0x68] sm:$0xff]
        %v203 = vld [vmem:[%s151 + $0x88] sm:$0xff]
        %v204 = vld [vmem:[%s151 + $0xa8] sm:$0xff]
        %v205 = vld [vmem:[%s151 + $0xc8] sm:$0xff]
        %v206 = vld [vmem:[%s151 + $0xe8] sm:$0xff]
        %v207 = vlaneseq
        %v208 = vshrl.u32 %v207, 7
        %v209 = vsub.s32 1, %v208
        %v210 = vrot.slane %v178, %v209
        %v211 = vmul.f32 %v199, %v210
        %v212 = vmul.f32 %v200, %v210
        %v213 = vmul.f32 %v201, %v210
        %v214 = vmul.f32 %v202, %v210
        %v215 = vmul.f32 %v203, %v210
        %v216 = vmul.f32 %v204, %v210
        %v217 = vmul.f32 %v205, %v210
        %v218 = vmul.f32 %v206, %v210
        %v219 = vadd.f32 %v191, %v211
        %v220 = vadd.f32 %v192, %v212
        %v221 = vadd.f32 %v193, %v213
        %v222 = vadd.f32 %v194, %v214
        %v223 = vadd.f32 %v195, %v215
        %v224 = vadd.f32 %v196, %v216
        %v225 = vadd.f32 %v197, %v217
        %v226 = vadd.f32 %v198, %v218
        %v227 = vld [vmem:[%s151 + $0x10] sm:$0xff]
        %v228 = vld [vmem:[%s151 + $0x30] sm:$0xff]
        %v229 = vld [vmem:[%s151 + $0x50] sm:$0xff]
        %v230 = vld [vmem:[%s151 + $0x70] sm:$0xff]
        %v231 = vld [vmem:[%s151 + $0x90] sm:$0xff]
        %v232 = vld [vmem:[%s151 + $0xb0] sm:$0xff]
        %v233 = vld [vmem:[%s151 + $0xd0] sm:$0xff]
        %v234 = vld [vmem:[%s151 + $0xf0] sm:$0xff]
        %v235 = vlaneseq
        %v236 = vshrl.u32 %v235, 7
        %v237 = vsub.s32 2, %v236
        %v238 = vrot.slane %v178, %v237
        %v239 = vmul.f32 %v227, %v238
        %v240 = vmul.f32 %v228, %v238
        %v241 = vmul.f32 %v229, %v238
        %v242 = vmul.f32 %v230, %v238
        %v243 = vmul.f32 %v231, %v238
        %v244 = vmul.f32 %v232, %v238
        %v245 = vmul.f32 %v233, %v238
        %v246 = vmul.f32 %v234, %v238
        %v247 = vadd.f32 %v219, %v239
        %v248 = vadd.f32 %v220, %v240
        %v249 = vadd.f32 %v221, %v241
        %v250 = vadd.f32 %v222, %v242
        %v251 = vadd.f32 %v223, %v243
        %v252 = vadd.f32 %v224, %v244
        %v253 = vadd.f32 %v225, %v245
        %v254 = vadd.f32 %v226, %v246
        %v255 = vld [vmem:[%s151 + $0x18] sm:$0xff]
        %v256 = vld [vmem:[%s151 + $0x38] sm:$0xff]
        %v257 = vld [vmem:[%s151 + $0x58] sm:$0xff]
        %v258 = vld [vmem:[%s151 + $0x78] sm:$0xff]
        %v259 = vld [vmem:[%s151 + $0x98] sm:$0xff]
        %v260 = vld [vmem:[%s151 + $0xb8] sm:$0xff]
        %v261 = vld [vmem:[%s151 + $0xd8] sm:$0xff]
        %v262 = vld [vmem:[%s151 + $0xf8] sm:$0xff]
        %v263 = vlaneseq
        %v264 = vshrl.u32 %v263, 7
        %v265 = vsub.s32 3, %v264
        %v266 = vrot.slane %v178, %v265
        %v267 = vmul.f32 %v255, %v266
        %v268 = vmul.f32 %v256, %v266
        %v269 = vmul.f32 %v257, %v266
        %v270 = vmul.f32 %v258, %v266
        %v271 = vmul.f32 %v259, %v266
        %v272 = vmul.f32 %v260, %v266
        %v273 = vmul.f32 %v261, %v266
        %v274 = vmul.f32 %v262, %v266
        %v275 = vadd.f32 %v247, %v267
        %v276 = vadd.f32 %v248, %v268
        %v277 = vadd.f32 %v249, %v269
        %v278 = vadd.f32 %v250, %v270
        %v279 = vadd.f32 %v251, %v271
        %v280 = vadd.f32 %v252, %v272
        %v281 = vadd.f32 %v253, %v273
        %v282 = vadd.f32 %v254, %v274
        %283 = vst [vmem:[%s175] sm:$0xff] %v275
        %284 = vst [vmem:[%s175 + $0x8] sm:$0xff] %v276
        %285 = vst [vmem:[%s175 + $0x10] sm:$0xff] %v277
        %286 = vst [vmem:[%s175 + $0x18] sm:$0xff] %v278
        %287 = vst [vmem:[%s175 + $0x20] sm:$0xff] %v279
        %288 = vst [vmem:[%s175 + $0x28] sm:$0xff] %v280
        %289 = vst [vmem:[%s175 + $0x30] sm:$0xff] %v281
        %290 = vst [vmem:[%s175 + $0x38] sm:$0xff] %v282
        %s291 = sand.u32 %s75, 1
        %s292 = scalar_lea.sflag [#allocation4], %s291
        %s293 = sand.u32 %s75, 1
        %s294 = smul.addr %s293, 64
        %s295 = scalar_lea.vmem [#allocation7], %s294
        // Predicated region
        $region37: #{tpu_custom_call.1} parent=27 // pred_check
          %p296 = pneg %p85
        $region38: #{tpu_custom_call.1} parent=27 // pred_check_branch
          %298 = sbr.rel (%p296) target = $region40
        $region39: #{tpu_custom_call.1} parent=27 // pred_region
          %s299 = smul.u32 8, %s20
          %s301 = ssub.s32 1024, 1024
          %302 = vsyncadd %s292, %s301
          %s303 = smul.addr %s299, 128
          %s304 = scalar_lea.hbm %s2, %s303
          %s305 = sshll.u32 %s295, 4
          %s306 = int_to_ptr.vmem [resolvable:$true] %s305
          %311 = dma.vmem_to_hbm [thread:$0]  %s306, 1024, %s304, %s292, 128, 128, 8
        $region40: #{tpu_custom_call.1} parent=27 // pred_fallthru
          _
      $region28: #{tpu_custom_call.1} parent=5 // pred_fallthru
        _
      %p312 = scmp.le.s32.totalorder 2, %s15
      // Predicated region
      $region41: #{tpu_custom_call.1} parent=5 // pred_check
        %p313 = pneg %p312
      $region42: #{tpu_custom_call.1} parent=5 // pred_check_branch
        %315 = sbr.rel (%p313) target = $region44
      $region43: #{tpu_custom_call.1} parent=5 // pred_region
        %s316 = ssub.s32 %s15, 2
        // Predicated region
        $region45: #{tpu_custom_call.1} parent=43 // pred_check
          %p317 = pneg %p91
        $region46: #{tpu_custom_call.1} parent=43 // pred_check_branch
          %319 = sbr.rel (%p317) target = $region48
        $region47: #{tpu_custom_call.1} parent=43 // pred_region
          %s320 = sand.u32 %s76, 1
          %s321 = scalar_lea.sflag [#allocation4], %s320
          %s322 = sand.u32 %s76, 1
          %s323 = smul.addr %s322, 64
          %s324 = scalar_lea.vmem [#allocation7], %s323
          %325 = dma.done %s321, 1024
        $region48: #{tpu_custom_call.1} parent=43 // pred_fallthru
          _
      $region44: #{tpu_custom_call.1} parent=5 // pred_fallthru
        _
    $region6: #{tpu_custom_call.1} parent=1 // loop_footer
      %s19 = sadd.s32 1, %s15
    $region7: #{tpu_custom_call.1} parent=1 // loop_footer_branch
      %14 = sbr.rel target = $region3
    $region8: #{tpu_custom_call.1} parent=1 // loop_exit
      _
    %326 = vsyncpa [#allocation3], 1
    %s327 = scalar_lea.sflag [#allocation3], 1
    %328 = vsyncpa %s327, 1
    %329 = vsyncpa [#allocation6], 1
    %330 = vsyncpa [#allocation4], 1
    %s331 = scalar_lea.sflag [#allocation4], 1
    %332 = vsyncpa %s331, 1

</llo_original>
